<compile_context>
chip_gen: v6e
topology: v6e:2x2x1
jax: 0.10.0
libtpu: 0.0.40
codegen_flags: <defaults>
</compile_context>

<pallas_src>
import jax
import jax.numpy as jnp
from jax.experimental import pallas as pl
from jax.experimental.pallas import tpu as pltpu

# ---- static "args" (deterministic, stands in for the argparse config) ------
N = 2          # batch
IC = 4         # args.ic
OC = 8         # args.oc
H = 16         # args.h
W = 16         # args.w
KH = 3         # args.kh
KW = 3         # args.kw
STRIDE = 1     # args.stride
PH = 1         # args.ph
PW = 1         # args.pw
# dilate=1, groups=1, bias=True

HP = H + 2 * PH
WP = W + 2 * PW
OH = (HP - KH) // STRIDE + 1     # 16
OW = (WP - KW) // STRIDE + 1     # 16
K = KH * KW * IC                 # 36  contraction dim
PER_N = OH * OW                  # 256 = 2 x 128 lanes per batch element
P = N * PER_N                    # 512 lane dim (n slow, then h, then w)


def hard_silu_conv_kernel(p_ref, w_ref, b_ref, o_ref):
    """Single invocation; everything resident in VMEM.

    p_ref: (K, P)   = (36, 512)  im2col patches, row = (kh*KW + kw)*IC + ic
    w_ref: (OC, K)  = (8, 36)    flattened conv weights (same row ordering)
    b_ref: (OC, 1)  = (8, 1)     bias
    o_ref: (N, OC, OH*OW) = (2, 8, 256)  lane-dense output
    """
    # One MXU matmul; accumulator is lane-dense: OC rows x 512 lanes.
    acc = jnp.dot(w_ref[...], p_ref[...], preferred_element_type=jnp.float32)
    y = acc + b_ref[...]                              # bias broadcast over lanes
    hs = jnp.clip(y * (1.0 / 6.0) + 0.5, 0.0, 1.0)    # Hardsigmoid
    out = y * hs                                      # x * hardsigmoid(x)
    # Per-batch lane slices are aligned to 128-lane tiles (PER_N = 256).
    for n in range(N):
        o_ref[n] = out[:, n * PER_N:(n + 1) * PER_N]


@jax.jit
def net_hard_silu(x_nchw, w_oihw, bias):
    """x_nchw: (N, IC, H, W) f32 -> (N, OC, OH, OW) f32 (same as PyTorch NCHW)."""
    # Spatial zero-padding (stays NCHW; no layout transposes at the boundary).
    x_pad = jnp.pad(x_nchw, ((0, 0), (0, 0), (PH, PH), (PW, PW)))    # (N, IC, HP, WP)
    xt = jnp.transpose(x_pad, (1, 0, 2, 3))                          # (IC, N, HP, WP)

    # im2col: rows ordered (kh, kw, ic); columns ordered (n, h, w).
    taps = [xt[:, :, kh:kh + OH, kw:kw + OW].reshape(IC, P)
            for kh in range(KH) for kw in range(KW)]
    patches = jnp.concatenate(taps, axis=0)                          # (36, 512)

    # (OC, IC, KH, KW) -> (OC, KH*KW*IC), matching the patch-row ordering.
    w_flat = jnp.transpose(w_oihw, (0, 2, 3, 1)).reshape(OC, K)
    b2d = bias.reshape(OC, 1)

    out = pl.pallas_call(
        hard_silu_conv_kernel,
        out_shape=jax.ShapeDtypeStruct((N, OC, PER_N), jnp.float32),
        in_specs=[
            pl.BlockSpec(memory_space=pltpu.MemorySpace.VMEM),   # patches (36, 512)
            pl.BlockSpec(memory_space=pltpu.MemorySpace.VMEM),   # weights (8, 36)
            pl.BlockSpec(memory_space=pltpu.MemorySpace.VMEM),   # bias    (8, 1)
        ],
        out_specs=pl.BlockSpec(memory_space=pltpu.MemorySpace.VMEM),
    )(patches, w_flat, b2d)

    # (N, OC, OH*OW) -> (N, OC, OH, OW): cheap reshape, no transpose.
    return out.reshape(N, OC, OH, OW)


def _reference(x_nchw, w_oihw, bias):
    """Pure-JAX reference (lax conv) for correctness checking."""
    y = jax.lax.conv_general_dilated(
        x_nchw, w_oihw,
        window_strides=(STRIDE, STRIDE),
        padding=((PH, PH), (PW, PW)),
        dimension_numbers=("NCHW", "OIHW", "NCHW"))
    y = y + bias.reshape(1, OC, 1, 1)
    hs = jnp.clip(y / 6.0 + 0.5, 0.0, 1.0)
    return y * hs


if __name__ == "__main__":
    key = jax.random.PRNGKey(0)
    kx, kw, kb = jax.random.split(key, 3)

    x = jax.random.normal(kx, (N, IC, H, W), dtype=jnp.float32)
    w = jax.random.normal(kw, (OC, IC, KH, KW), dtype=jnp.float32) * 0.1
    b = jax.random.normal(kb, (OC,), dtype=jnp.float32) * 0.1

    out = net_hard_silu(x, w, b)
    out = jax.block_until_ready(out)

    ref = _reference(x, w, b)
    assert out.shape == (N, OC, OH, OW)
    assert jnp.allclose(out, ref, atol=1e-4, rtol=1e-4), "mismatch vs reference"

    print("KERNEL_OK")
</pallas_src>

<mosaic_0001>
module attributes {stable_mosaic.version = 11 : i64} {
  func.func @hard_silu_conv_kernel(%arg0: memref<36x512xf32, #tpu.memory_space<vmem>>, %arg1: memref<8x36xf32, #tpu.memory_space<vmem>>, %arg2: memref<8x1xf32, #tpu.memory_space<vmem>>, %arg3: memref<2x8x256xf32, #tpu.memory_space<vmem>>) attributes {dimension_semantics = [], scalar_prefetch = 0 : i64, scratch_operands = 0 : i64, tpu.core_type = #tpu.core_type<tc>} {
    %c0 = arith.constant 0 : index
    %c0_0 = arith.constant 0 : index
    %0 = vector.load %arg1[%c0, %c0_0] : memref<8x36xf32, #tpu.memory_space<vmem>>, vector<8x36xf32>
    %c0_1 = arith.constant 0 : index
    %c0_2 = arith.constant 0 : index
    %1 = vector.load %arg0[%c0_1, %c0_2] : memref<36x512xf32, #tpu.memory_space<vmem>>, vector<36x512xf32>
    %cst = arith.constant dense<0.000000e+00> : vector<8x512xf32>
    %2 = tpu.matmul %0, %1, %cst {dimension_numbers = #tpu.dot_dimension_numbers<[1], [0], [0], [1], [0, 0, 1, 1], [], []>} : vector<8x36xf32>, vector<36x512xf32>, vector<8x512xf32> -> vector<8x512xf32>
    %c0_3 = arith.constant 0 : index
    %c0_4 = arith.constant 0 : index
    %3 = vector.load %arg2[%c0_3, %c0_4] : memref<8x1xf32, #tpu.memory_space<vmem>>, vector<8x1xf32>
    %4 = vector.broadcast %3 : vector<8x1xf32> to vector<8x512xf32>
    %5 = arith.addf %2, %4 : vector<8x512xf32>
    %cst_5 = arith.constant 0.166666672 : f32
    %6 = vector.broadcast %cst_5 : f32 to vector<8x512xf32>
    %7 = arith.mulf %5, %6 : vector<8x512xf32>
    %cst_6 = arith.constant 5.000000e-01 : f32
    %8 = vector.broadcast %cst_6 : f32 to vector<8x512xf32>
    %9 = arith.addf %7, %8 : vector<8x512xf32>
    %cst_7 = arith.constant 0.000000e+00 : f32
    %cst_8 = arith.constant 1.000000e+00 : f32
    %10 = vector.broadcast %cst_7 : f32 to vector<8x512xf32>
    %11 = arith.maximumf %10, %9 : vector<8x512xf32>
    %12 = vector.broadcast %cst_8 : f32 to vector<8x512xf32>
    %13 = arith.minimumf %12, %11 : vector<8x512xf32>
    %14 = arith.mulf %5, %13 : vector<8x512xf32>
    %15 = vector.extract_strided_slice %14 {offsets = [0, 0], sizes = [8, 256], strides = [1, 1]} : vector<8x512xf32> to vector<8x256xf32>
    %c0_9 = arith.constant 0 : index
    %c0_10 = arith.constant 0 : index
    %c0_11 = arith.constant 0 : index
    %16 = vector.load %arg3[%c0_9, %c0_10, %c0_11] : memref<2x8x256xf32, #tpu.memory_space<vmem>>, vector<1x8x256xf32>
    %17 = vector.shape_cast %16 : vector<1x8x256xf32> to vector<8x256xf32>
    %18 = vector.shape_cast %15 : vector<8x256xf32> to vector<1x8x256xf32>
    tpu.vector_store %arg3[%c0_9, %c0_10, %c0_11], %18 {strides = array<i32>} : memref<2x8x256xf32, #tpu.memory_space<vmem>>, vector<1x8x256xf32>,
    %19 = vector.extract_strided_slice %14 {offsets = [0, 256], sizes = [8, 256], strides = [1, 1]} : vector<8x512xf32> to vector<8x256xf32>
    %c1 = arith.constant 1 : index
    %c0_12 = arith.constant 0 : index
    %c0_13 = arith.constant 0 : index
    %20 = vector.load %arg3[%c1, %c0_12, %c0_13] : memref<2x8x256xf32, #tpu.memory_space<vmem>>, vector<1x8x256xf32>
    %21 = vector.shape_cast %20 : vector<1x8x256xf32> to vector<8x256xf32>
    %22 = vector.shape_cast %19 : vector<8x256xf32> to vector<1x8x256xf32>
    tpu.vector_store %arg3[%c1, %c0_12, %c0_13], %22 {strides = array<i32>} : memref<2x8x256xf32, #tpu.memory_space<vmem>>, vector<1x8x256xf32>,
    return
  }
}

</mosaic_0001>

<llo_original>
// kernel: net_hard_silu.1
$region0: #{net_hard_silu.1}
  #allocation0 [shape = 'u32[]', space=smem, size = 0x4, offset = 0x4, fixed_abs, tag = 'smem constant byte address 0x4 - core index']
  #allocation1 [shape = 'u32[144,128]{1,0:T(1,128)}', space=vmem, size = 0x12000, scoped, tag = 'internal scratch']
  %s0 = inlined_call_operand.vmem [shape: f32[36,512], index: 0, kind: input, shape index: {}]
  %s1 = inlined_call_operand.vmem [shape: f32[8,36], index: 1, kind: input, shape index: {}]
  %s2 = inlined_call_operand.vmem [shape: f32[8,1], index: 2, kind: input, shape index: {}]
  %s3 = inlined_call_operand.vmem [shape: f32[2,8,256], index: 3, kind: output, shape index: {}]
  %s4 = sld [smem:[#allocation0]]
  $region22: #{net_hard_silu.1} parent=0
    _
  %s6 = ssub.s32 1, %s4
  %s7 = scalar_select 0, %s6, %s4
  // Predicated region
  $region2: #{net_hard_silu.1} parent=0 // pred_check
    _
  $region3: #{net_hard_silu.1} parent=0 // pred_check_branch
    %9 = sbr.rel (0) target = $region5
  $region4: #{net_hard_silu.1} parent=0 // pred_region
    _
  $region5: #{net_hard_silu.1} parent=0 // pred_fallthru
    _
  // Predicated region
  $region6: #{net_hard_silu.1} parent=0 // pred_check
    _
  $region7: #{net_hard_silu.1} parent=0 // pred_check_branch
    %11 = sbr.rel (0) target = $region9
  $region8: #{net_hard_silu.1} parent=0 // pred_region
    _
  $region9: #{net_hard_silu.1} parent=0 // pred_fallthru
    _
  // Predicated region
  $region10: #{net_hard_silu.1} parent=0 // pred_check
    _
  $region11: #{net_hard_silu.1} parent=0 // pred_check_branch
    %13 = sbr.rel (0) target = $region13
  $region12: #{net_hard_silu.1} parent=0 // pred_region
    _
  $region13: #{net_hard_silu.1} parent=0 // pred_fallthru
    _
  %v14 = vld [vmem:[%s1] sm:$0xff]
  %v15 = vld [vmem:[%s0] sm:$0xff]
  %v16 = vld [vmem:[%s0 + $0x8] sm:$0xff]
  %v17 = vld [vmem:[%s0 + $0x10] sm:$0xff]
  %v18 = vld [vmem:[%s0 + $0x18] sm:$0xff]
  %v19 = vld [vmem:[%s0 + $0x20] sm:$0xff]
  %v20 = vld [vmem:[%s0 + $0x28] sm:$0xff]
  %v21 = vld [vmem:[%s0 + $0x30] sm:$0xff]
  %v22 = vld [vmem:[%s0 + $0x38] sm:$0xff]
  %v23 = vld [vmem:[%s0 + $0x40] sm:$0xff]
  %v24 = vld [vmem:[%s0 + $0x48] sm:$0xff]
  %v25 = vld [vmem:[%s0 + $0x50] sm:$0xff]
  %v26 = vld [vmem:[%s0 + $0x58] sm:$0xff]
  %v27 = vld [vmem:[%s0 + $0x60] sm:$0xff]
  %v28 = vld [vmem:[%s0 + $0x68] sm:$0xff]
  %v29 = vld [vmem:[%s0 + $0x70] sm:$0xff]
  %v30 = vld [vmem:[%s0 + $0x78] sm:$0xff]
  %v31 = vld [vmem:[%s0 + $0x80] sm:$0xf]
  %v32 = vld [vmem:[%s0 + $0x88] sm:$0xf]
  %v33 = vld [vmem:[%s0 + $0x90] sm:$0xf]
  %v34 = vld [vmem:[%s0 + $0x98] sm:$0xf]
  %v35 = vld [vmem:[%s2] sm:$0xff]
  %37 = vset.pattern.permute.xlu0 0
  %38 = vperm.xlu0 %37, %v35
  %v39 = vpop.permute.xlu0 %38
  %vm41 = vcmask 293888
  %v43 = vsel %vm41, %v14, 0
  %vm45 = vcmask 1043456
  %v47 = vsel %vm45, %v31, 0
  %v50 = vsel %vm45, %v32, 0
  %v53 = vsel %vm45, %v33, 0
  %v56 = vsel %vm45, %v34, 0
  %58 = vmatprep.subr.mxu0 0.0
  %59 = vmatpush1.msra.mxu0 0.0
  %60 = vmatprep.subr.mxu0 0.0
  %61 = vmatpush1.msra.mxu0 0.0
  %62 = vmatprep.subr.mxu0 0.0
  %63 = vmatpush1.msra.mxu0 0.0
  %64 = vmatprep.subr.mxu0 0.0
  %65 = vmatpush1.msra.mxu0 0.0
  %66 = vmatprep.subr.mxu0 0.0
  %67 = vmatpush1.msra.mxu0 0.0
  %68 = vmatprep.subr.mxu0 0.0
  %69 = vmatpush1.msra.mxu0 0.0
  %70 = vmatprep.subr.mxu0 0.0
  %71 = vmatpush1.msra.mxu0 0.0
  %72 = vmatprep.subr.mxu0 0.0
  %73 = vmatpush1.msra.mxu0 0.0
  %74 = vmatprep.subr.mxu0 0.0
  %75 = vmatpush1.msra.mxu0 0.0
  %76 = vmatprep.subr.mxu0 0.0
  %77 = vmatpush1.msra.mxu0 0.0
  %78 = vmatprep.subr.mxu0 0.0
  %79 = vmatpush1.msra.mxu0 0.0
  %80 = vmatprep.subr.mxu0 %v50
  %81 = vmatpush1.msra.mxu0 %v47
  %82 = vmatprep.subr.mxu0 %v28
  %83 = vmatpush1.msra.mxu0 %v27
  %84 = vmatprep.subr.mxu0 %v24
  %85 = vmatpush1.msra.mxu0 %v23
  %86 = vmatprep.subr.mxu0 %v20
  %87 = vmatpush1.msra.mxu0 %v19
  %88 = vmatprep.subr.mxu0 %v16
  %89 = vmatpush1.msra.mxu0 %v15
  %90 = vmatprep.subr.mxu0 0.0
  %91 = vmatpush2.msra.mxu0 0.0
  %92 = vmatprep.subr.mxu0 0.0
  %93 = vmatpush2.msra.mxu0 0.0
  %94 = vmatprep.subr.mxu0 0.0
  %95 = vmatpush2.msra.mxu0 0.0
  %96 = vmatprep.subr.mxu0 0.0
  %97 = vmatpush2.msra.mxu0 0.0
  %98 = vmatprep.subr.mxu0 0.0
  %99 = vmatpush2.msra.mxu0 0.0
  %100 = vmatprep.subr.mxu0 0.0
  %101 = vmatpush2.msra.mxu0 0.0
  %102 = vmatprep.subr.mxu0 0.0
  %103 = vmatpush2.msra.mxu0 0.0
  %104 = vmatprep.subr.mxu0 0.0
  %105 = vmatpush2.msra.mxu0 0.0
  %106 = vmatprep.subr.mxu0 0.0
  %107 = vmatpush2.msra.mxu0 0.0
  %108 = vmatprep.subr.mxu0 0.0
  %109 = vmatpush2.msra.mxu0 0.0
  %110 = vmatprep.subr.mxu0 0.0
  %111 = vmatpush2.msra.mxu0 0.0
  %112 = vmatprep.subr.mxu0 0.0
  %113 = vmatpush2.msra.mxu0 0.0
  %114 = vmatprep.subr.mxu0 0.0
  %115 = vmatpush2.msra.mxu0 0.0
  %116 = vmatprep.subr.mxu0 0.0
  %117 = vmatpush2.msra.mxu0 0.0
  %118 = vmatprep.subr.mxu0 0.0
  %119 = vmatpush2.msra.mxu0 0.0
  %120 = vmatprep.subr.mxu0 0.0
  %121 = vmatpush2.msra.mxu0 0.0
  %122 = vmatprep.mubr.f32.mxu0 0.0
  %123 = vmatmul.mubr.f32.gmra.mxu0 %v43
  %v124 = vpop.f32.mrf.mxu0
  %v125 = vadd.f32 %v39, %v124
  %v126 = vpop.f32.mrf.mxu0
  %v127 = vadd.f32 %v39, %v126
  %128 = vdwg.mxu0
  %129 = vmatprep.subr.mxu0 0.0
  %130 = vmatpush1.msra.mxu0 0.0
  %131 = vmatprep.subr.mxu0 0.0
  %132 = vmatpush1.msra.mxu0 0.0
  %133 = vmatprep.subr.mxu0 0.0
  %134 = vmatpush1.msra.mxu0 0.0
  %135 = vmatprep.subr.mxu0 0.0
  %136 = vmatpush1.msra.mxu0 0.0
  %137 = vmatprep.subr.mxu0 0.0
  %138 = vmatpush1.msra.mxu0 0.0
  %139 = vmatprep.subr.mxu0 0.0
  %140 = vmatpush1.msra.mxu0 0.0
  %141 = vmatprep.subr.mxu0 0.0
  %142 = vmatpush1.msra.mxu0 0.0
  %143 = vmatprep.subr.mxu0 0.0
  %144 = vmatpush1.msra.mxu0 0.0
  %145 = vmatprep.subr.mxu0 0.0
  %146 = vmatpush1.msra.mxu0 0.0
  %147 = vmatprep.subr.mxu0 0.0
  %148 = vmatpush1.msra.mxu0 0.0
  %149 = vmatprep.subr.mxu0 0.0
  %150 = vmatpush1.msra.mxu0 0.0
  %151 = vmatprep.subr.mxu0 %v56
  %152 = vmatpush1.msra.mxu0 %v53
  %153 = vmatprep.subr.mxu0 %v30
  %154 = vmatpush1.msra.mxu0 %v29
  %155 = vmatprep.subr.mxu0 %v26
  %156 = vmatpush1.msra.mxu0 %v25
  %157 = vmatprep.subr.mxu0 %v22
  %158 = vmatpush1.msra.mxu0 %v21
  %159 = vmatprep.subr.mxu0 %v18
  %160 = vmatpush1.msra.mxu0 %v17
  %161 = vmatprep.subr.mxu0 0.0
  %162 = vmatpush2.msra.mxu0 0.0
  %163 = vmatprep.subr.mxu0 0.0
  %164 = vmatpush2.msra.mxu0 0.0
  %165 = vmatprep.subr.mxu0 0.0
  %166 = vmatpush2.msra.mxu0 0.0
  %167 = vmatprep.subr.mxu0 0.0
  %168 = vmatpush2.msra.mxu0 0.0
  %169 = vmatprep.subr.mxu0 0.0
  %170 = vmatpush2.msra.mxu0 0.0
  %171 = vmatprep.subr.mxu0 0.0
  %172 = vmatpush2.msra.mxu0 0.0
  %173 = vmatprep.subr.mxu0 0.0
  %174 = vmatpush2.msra.mxu0 0.0
  %175 = vmatprep.subr.mxu0 0.0
  %176 = vmatpush2.msra.mxu0 0.0
  %177 = vmatprep.subr.mxu0 0.0
  %178 = vmatpush2.msra.mxu0 0.0
  %179 = vmatprep.subr.mxu0 0.0
  %180 = vmatpush2.msra.mxu0 0.0
  %181 = vmatprep.subr.mxu0 0.0
  %182 = vmatpush2.msra.mxu0 0.0
  %183 = vmatprep.subr.mxu0 0.0
  %184 = vmatpush2.msra.mxu0 0.0
  %185 = vmatprep.subr.mxu0 0.0
  %186 = vmatpush2.msra.mxu0 0.0
  %187 = vmatprep.subr.mxu0 0.0
  %188 = vmatpush2.msra.mxu0 0.0
  %189 = vmatprep.subr.mxu0 0.0
  %190 = vmatpush2.msra.mxu0 0.0
  %191 = vmatprep.subr.mxu0 0.0
  %192 = vmatpush2.msra.mxu0 0.0
  %193 = vmatprep.mubr.f32.mxu0 0.0
  %194 = vmatmul.mubr.f32.gmra.mxu0 %v43
  %v195 = vpop.f32.mrf.mxu0
  %v196 = vadd.f32 %v39, %v195
  %v197 = vpop.f32.mrf.mxu0
  %v198 = vadd.f32 %v39, %v197
  %199 = vdwg.mxu0
  %v200 = vmul.f32 %v125, 0.16666667
  %v201 = vmul.f32 %v127, 0.16666667
  %v202 = vmul.f32 %v196, 0.16666667
  %v203 = vmul.f32 %v198, 0.16666667
  %v204 = vadd.f32 %v200, 0.5
  %v205 = vadd.f32 %v201, 0.5
  %v206 = vadd.f32 %v202, 0.5
  %v207 = vadd.f32 %v203, 0.5
  %v208 = vmax.f32 %v204, 0.0
  %v209 = vmax.f32 %v205, 0.0
  %v210 = vmax.f32 %v206, 0.0
  %v211 = vmax.f32 %v207, 0.0
  %v212 = vmin.f32 %v208, 1.0
  %v213 = vmin.f32 %v209, 1.0
  %v214 = vmin.f32 %v210, 1.0
  %v215 = vmin.f32 %v211, 1.0
  %v216 = vmul.f32 %v125, %v212
  %v217 = vmul.f32 %v127, %v213
  %v218 = vmul.f32 %v196, %v214
  %v219 = vmul.f32 %v198, %v215
  %220 = vst [vmem:[%s3] sm:$0xff] %v216
  %221 = vst [vmem:[%s3 + $0x8] sm:$0xff] %v217
  %s222 = scalar_lea.vmem %s3, 16
  %223 = vst [vmem:[%s222] sm:$0xff] %v218
  %224 = vst [vmem:[%s222 + $0x8] sm:$0xff] %v219
  // Predicated region
  $region14: #{net_hard_silu.1} parent=0 // pred_check
    _
  $region15: #{net_hard_silu.1} parent=0 // pred_check_branch
    %226 = sbr.rel (0) target = $region17
  $region16: #{net_hard_silu.1} parent=0 // pred_region
    _
  $region17: #{net_hard_silu.1} parent=0 // pred_fallthru
    _
  // Predicated region
  $region18: #{net_hard_silu.1} parent=0 // pred_check
    _
  $region19: #{net_hard_silu.1} parent=0 // pred_check_branch
    %228 = sbr.rel (0) target = $region21
  $region20: #{net_hard_silu.1} parent=0 // pred_region
    _
  $region21: #{net_hard_silu.1} parent=0 // pred_fallthru
    _

</llo_original>
